<compile_context>
chip_gen: v7x
topology: tpu7x:2x2x1
jax: 0.10.0
libtpu: 0.0.40
codegen_flags: <defaults>
</compile_context>

<pallas_src>
import functools

import jax
import jax.numpy as jnp
from jax.experimental import pallas as pl
from jax.experimental.pallas import tpu as pltpu

_LANE = 128


def _vmem_capacity_bytes():
    try:
        return int(getattr(pltpu.get_tpu_info(), "vmem_capacity_bytes",
                           64 * 1024 * 1024))
    except Exception:
        return 64 * 1024 * 1024          # conservative (v7x-sized) fallback


_VMEM_PHYS = _vmem_capacity_bytes()
# 128 MiB physical (v5e/v6e) -> 96 MiB vmem limit, 8 MiB logits block.
# 64 MiB physical (v7x)      -> 48 MiB vmem limit, 4 MiB logits block.
# Leaves headroom for double buffering + the f32 temporaries of bf16 blocks.
_VMEM_LIMIT = min((3 * _VMEM_PHYS) // 4, 96 * 1024 * 1024)
_BLOCK_BYTES = min(_VMEM_PHYS // 16, 8 * 1024 * 1024)
_ROW_CAP = 2048   # keeps the lane-padded (tile,1) aux/scratch footprint modest


def _plan(n, c, itemsize, block_bytes):
    """Pick (row_tile, class_tile) so one logits block is ~block_bytes."""
    gran = 16 if itemsize == 2 else 8            # bf16 packs 2 rows per sublane
    if c * itemsize * gran <= block_bytes:
        ctile = c                                 # whole class axis per block
        tile = block_bytes // (c * itemsize)
        tile = max(gran, min(_ROW_CAP, (tile // gran) * gran))
    else:
        # Huge class count (LLM vocab): split the class axis, logsumexp online.
        tile = gran
        ctile = (block_bytes // (gran * itemsize) // _LANE) * _LANE
        ctile = max(_LANE, min(ctile, ((c + _LANE - 1) // _LANE) * _LANE))
    n_up = ((n + gran - 1) // gran) * gran
    tile = min(tile, n_up)
    return tile, ctile


def _make_kernel(ctile, c_total):
    mask_class_tail = (c_total % ctile) != 0      # static specialization

    def kernel(x_ref, aux_ref, out_ref, m_ref, l_ref, g_ref):
        j = pl.program_id(1)                      # class-tile index (innermost)

        @pl.when(j == 0)
        def _init():
            m_ref[...] = jnp.full_like(m_ref, -jnp.inf)
            l_ref[...] = jnp.zeros_like(l_ref)
            g_ref[...] = jnp.zeros_like(g_ref)

        x = x_ref[...]                            # native dtype (tile, ctile)
        lab_f = aux_ref[:, 0:1]                   # labels stored as f32 (exact < 2**24)
        lab = lab_f.astype(jnp.int32)

        col = jax.lax.broadcasted_iota(jnp.int32, x.shape, 1) + j * ctile
        if mask_class_tail:                       # only emitted when C % ctile != 0
            x = jnp.where(col < c_total, x, jnp.asarray(-jnp.inf, dtype=x.dtype))

        # Gather x[row, label] via lane-iota one-hot (exact in any dtype: at most
        # one non-zero term per row across all class tiles).
        zero = jnp.zeros((), dtype=x.dtype)
        g_ref[...] += jnp.sum(jnp.where(col == lab, x, zero),
                              axis=1, keepdims=True).astype(jnp.float32)

        # Online logsumexp: max / subtract stay in the native dtype (bf16 VPU on
        # v6e/v7x); exp and accumulation are f32.
        # TODO(synk): on v7x, offload the sum-of-exp to the idle MXU via a
        # jnp.dot with a (ctile, 1) ones operand.
        blk_max = jnp.max(x, axis=1, keepdims=True).astype(jnp.float32)
        m_prev = m_ref[...]
        m_new = jnp.maximum(m_prev, blk_max)
        e = jnp.exp((x - m_new.astype(x.dtype)).astype(jnp.float32))
        l_ref[...] = l_ref[...] * jnp.exp(m_prev - m_new) + jnp.sum(
            e, axis=1, keepdims=True)
        m_ref[...] = m_new

        @pl.when(j == pl.num_programs(1) - 1)
        def _finalize():
            lse = jnp.log(l_ref[...]) + m_ref[...]
            beta = aux_ref[:, 1:2]
            valid = lab_f >= 0.0                  # negative labels are masked
            # jnp.where (not multiply) so garbage logits from the OOB tail
            # row-block can never poison the sums with Inf/NaN.
            w = jnp.where(valid, beta * (g_ref[...] - lse), 0.0)
            out_ref[0, 0] = jnp.sum(w)            # sum(beta * logp[label] * mask)
            out_ref[0, 1] = jnp.sum(jnp.where(valid, 1.0, 0.0))  # valid tokens

    return kernel


@functools.partial(jax.jit, static_argnames=("block_bytes",))
def cus2_loss(outputs, labels, beta, *, block_bytes=None):
    """Pallas TPU implementation of cus2.forward(outputs, labels, beta)."""
    n, c = outputs.shape
    itemsize = outputs.dtype.itemsize
    bb = _BLOCK_BYTES if block_bytes is None else block_bytes
    tile, ctile = _plan(n, c, itemsize, bb)
    rt = pl.cdiv(n, tile)
    ct = pl.cdiv(c, ctile)
    n_pad = rt * tile

    # Only the tiny (n, 2) aux array is padded; the logits go in unpadded and
    # the last row block's OOB rows are masked in-kernel (labels stay -1 here).
    aux = jnp.concatenate(
        [labels.reshape(-1, 1).astype(jnp.float32),
         beta.reshape(-1, 1).astype(jnp.float32)], axis=1)
    if n_pad != n:
        aux = jnp.pad(aux, ((0, n_pad - n), (0, 0)), constant_values=-1.0)

    cost = pl.CostEstimate(
        flops=8 * n * c,
        transcendentals=n * c,
        bytes_accessed=n * c * itemsize + n_pad * 8 + rt * 8,
    )

    parts = pl.pallas_call(
        _make_kernel(ctile, c),
        out_shape=jax.ShapeDtypeStruct((rt, 2), jnp.float32),
        grid_spec=pltpu.PrefetchScalarGridSpec(
            num_scalar_prefetch=0,
            grid=(rt, ct),
            in_specs=[
                # Logits in their native dtype (no wrapper upcast).
                # TODO(synk): pipeline_mode=pl.Buffered(3) when ct>1 forces tiny
                # row tiles and the DMA latency is exposed.
                pl.BlockSpec((tile, ctile), lambda i, j: (i, j)),
                pl.BlockSpec((tile, 2), lambda i, j: (i, 0)),   # [label, beta]
            ],
            # Two per-tile scalars in SMEM: no lane-sparse vst / per-row writeback.
            out_specs=pl.BlockSpec((1, 2), lambda i, j: (i, 0),
                                   memory_space=pltpu.MemorySpace.SMEM),
            scratch_shapes=[
                pltpu.VMEM((tile, 1), jnp.float32),   # running max
                pltpu.VMEM((tile, 1), jnp.float32),   # running sum(exp)
                pltpu.VMEM((tile, 1), jnp.float32),   # gathered logit
            ],
        ),
        compiler_params=pltpu.CompilerParams(
            # Rows independent (megacore-shardable); class axis is a reduction.
            # TODO(synk): if "parallel" does not shard rows across v7x's 2 TCs,
            # switch this axis to pltpu.CORE_PARALLEL.
            dimension_semantics=("parallel", "arbitrary"),
            vmem_limit_bytes=_VMEM_LIMIT,
        ),
        cost_estimate=cost,
    )(outputs, aux)

    # Tiny (n_tiles,)-sized final reduction in XLA.
    return -jnp.sum(parts[:, 0]) / jnp.sum(parts[:, 1])


def _reference(outputs, labels, beta):
    labels = labels.reshape(-1)
    beta = beta.reshape(-1).astype(jnp.float32)
    mask = (labels >= 0).astype(jnp.float32)
    num_tokens = jnp.sum(mask)
    logp = jax.nn.log_softmax(outputs.astype(jnp.float32), axis=1)
    gathered = logp[jnp.arange(outputs.shape[0]), labels] * mask
    return -jnp.sum(beta * gathered) / num_tokens


if __name__ == "__main__":
    key = jax.random.PRNGKey(0)
    k1, k2, k3 = jax.random.split(key, 3)

    # Case 1: f32 logits, N not a multiple of the row tile -> exercises the
    # unpadded / OOB tail row-block path.
    N, C = 50, 32
    outputs = jax.random.normal(k1, (N, C), dtype=jnp.float32)
    labels = jax.random.randint(k2, (N,), minval=-1, maxval=C, dtype=jnp.int32)
    beta = jax.random.uniform(k3, (N,), dtype=jnp.float32)

    loss = cus2_loss(outputs, labels, beta)
    jax.block_until_ready(loss)
    ref = _reference(outputs, labels, beta)
    assert jnp.allclose(loss, ref, rtol=1e-4, atol=1e-4), (loss, ref)

    # Case 2: bf16 logits read in native dtype (bf16 VPU elementwise path).
    outputs_bf16 = outputs.astype(jnp.bfloat16)
    loss_bf16 = cus2_loss(outputs_bf16, labels, beta)
    jax.block_until_ready(loss_bf16)
    ref_bf16 = _reference(outputs_bf16.astype(jnp.float32), labels, beta)
    assert jnp.allclose(loss_bf16, ref_bf16, rtol=2e-2, atol=2e-2), (loss_bf16, ref_bf16)

    # Case 3: tiny block budget forces a class-axis split -> exercises the
    # online-logsumexp + class-tail-mask path used for LLM-vocab class counts.
    N2, C2 = 20, 300
    o2 = jax.random.normal(k1, (N2, C2), dtype=jnp.float32)
    l2 = jax.random.randint(k2, (N2,), minval=-1, maxval=C2, dtype=jnp.int32)
    b2 = jax.random.uniform(k3, (N2,), dtype=jnp.float32)
    loss2 = cus2_loss(o2, l2, b2, block_bytes=8192)
    jax.block_until_ready(loss2)
    ref2 = _reference(o2, l2, b2)
    assert jnp.allclose(loss2, ref2, rtol=1e-4, atol=1e-4), (loss2, ref2)

    print("KERNEL_OK")
</pallas_src>

<mosaic_0001>
module attributes {stable_mosaic.version = 11 : i64} {
  func.func @kernel(%arg0: i32, %arg1: i32, %arg2: memref<56x32xf32, #tpu.memory_space<vmem>>, %arg3: memref<56x2xf32, #tpu.memory_space<vmem>>, %arg4: memref<1x2xf32, #tpu.memory_space<smem>>, %arg5: memref<56x1xf32, #tpu.memory_space<vmem>>, %arg6: memref<56x1xf32, #tpu.memory_space<vmem>>, %arg7: memref<56x1xf32, #tpu.memory_space<vmem>>) attributes {dimension_semantics = [#tpu.dimension_semantics<parallel>, #tpu.dimension_semantics<arbitrary>], iteration_bounds = array<i64: 1, 1>, scalar_prefetch = 0 : i64, scratch_operands = 3 : i64, tpu.core_type = #tpu.core_type<tc>, window_params = [{transform_indices = @transform_0, window_bounds = array<i64: 56, 32>}, {transform_indices = @transform_1, window_bounds = array<i64: 56, 2>}, {transform_indices = @transform_2, window_bounds = array<i64: 1, 2>}]} {
    %c0_i32 = arith.constant 0 : i32
    %0 = arith.cmpi eq, %arg1, %c0_i32 : i32
    %1 = arith.extui %0 : i1 to i32
    %c0_i32_0 = arith.constant 0 : i32
    %2 = arith.cmpi ne, %1, %c0_i32_0 : i32
    scf.if %2 {
      %cst_21 = arith.constant 0xFF800000 : f32
      %38 = vector.broadcast %cst_21 : f32 to vector<56x1xf32>
      %c0_22 = arith.constant 0 : index
      %c0_23 = arith.constant 0 : index
      %39 = vector.load %arg5[%c0_22, %c0_23] : memref<56x1xf32, #tpu.memory_space<vmem>>, vector<56x1xf32>
      tpu.vector_store %arg5[%c0_22, %c0_23], %38 {strides = array<i32>} : memref<56x1xf32, #tpu.memory_space<vmem>>, vector<56x1xf32>,
      %cst_24 = arith.constant 0.000000e+00 : f32
      %40 = vector.broadcast %cst_24 : f32 to vector<56x1xf32>
      %c0_25 = arith.constant 0 : index
      %c0_26 = arith.constant 0 : index
      %41 = vector.load %arg6[%c0_25, %c0_26] : memref<56x1xf32, #tpu.memory_space<vmem>>, vector<56x1xf32>
      tpu.vector_store %arg6[%c0_25, %c0_26], %40 {strides = array<i32>} : memref<56x1xf32, #tpu.memory_space<vmem>>, vector<56x1xf32>,
      %cst_27 = arith.constant 0.000000e+00 : f32
      %42 = vector.broadcast %cst_27 : f32 to vector<56x1xf32>
      %c0_28 = arith.constant 0 : index
      %c0_29 = arith.constant 0 : index
      %43 = vector.load %arg7[%c0_28, %c0_29] : memref<56x1xf32, #tpu.memory_space<vmem>>, vector<56x1xf32>
      tpu.vector_store %arg7[%c0_28, %c0_29], %42 {strides = array<i32>} : memref<56x1xf32, #tpu.memory_space<vmem>>, vector<56x1xf32>,
    } else {
    }
    %c0 = arith.constant 0 : index
    %c0_1 = arith.constant 0 : index
    %3 = vector.load %arg2[%c0, %c0_1] : memref<56x32xf32, #tpu.memory_space<vmem>>, vector<56x32xf32>
    %c0_2 = arith.constant 0 : index
    %c0_3 = arith.constant 0 : index
    %4 = vector.load %arg3[%c0_2, %c0_3] : memref<56x2xf32, #tpu.memory_space<vmem>>, vector<56x1xf32>
    %5 = arith.fptosi %4 : vector<56x1xf32> to vector<56x1xi32>
    %6 = tpu.iota {dimensions = array<i32: 1>} : vector<56x32xi32>
    %c32_i32 = arith.constant 32 : i32
    %7 = arith.muli %arg1, %c32_i32 : i32
    %8 = vector.broadcast %7 : i32 to vector<56x32xi32>
    %9 = arith.addi %6, %8 : vector<56x32xi32>
    %c0_4 = arith.constant 0 : index
    %c0_5 = arith.constant 0 : index
    %10 = vector.load %arg7[%c0_4, %c0_5] : memref<56x1xf32, #tpu.memory_space<vmem>>, vector<56x1xf32>
    %11 = vector.broadcast %5 : vector<56x1xi32> to vector<56x32xi32>
    %12 = arith.cmpi eq, %9, %11 : vector<56x32xi32>
    %cst = arith.constant 0.000000e+00 : f32
    %13 = vector.broadcast %cst : f32 to vector<56x32xf32>
    %14 = arith.select %12, %3, %13 : vector<56x32xi1>, vector<56x32xf32>
    %cst_6 = arith.constant dense<0.000000e+00> : vector<56xf32>
    %15 = vector.multi_reduction <add>, %14, %cst_6 [1] : vector<56x32xf32> to vector<56xf32>
    %16 = vector.shape_cast %15 : vector<56xf32> to vector<56x1xf32>
    %17 = arith.addf %10, %16 : vector<56x1xf32>
    %c0_7 = arith.constant 0 : index
    %c0_8 = arith.constant 0 : index
    %18 = vector.load %arg7[%c0_7, %c0_8] : memref<56x1xf32, #tpu.memory_space<vmem>>, vector<56x1xf32>
    tpu.vector_store %arg7[%c0_7, %c0_8], %17 {strides = array<i32>} : memref<56x1xf32, #tpu.memory_space<vmem>>, vector<56x1xf32>,
    %cst_9 = arith.constant dense<0xFF800000> : vector<56xf32>
    %19 = vector.multi_reduction <maximumf>, %3, %cst_9 [1] : vector<56x32xf32> to vector<56xf32>
    %20 = vector.shape_cast %19 : vector<56xf32> to vector<56x1xf32>
    %c0_10 = arith.constant 0 : index
    %c0_11 = arith.constant 0 : index
    %21 = vector.load %arg5[%c0_10, %c0_11] : memref<56x1xf32, #tpu.memory_space<vmem>>, vector<56x1xf32>
    %22 = arith.maximumf %21, %20 : vector<56x1xf32>
    %23 = vector.broadcast %22 : vector<56x1xf32> to vector<56x32xf32>
    %24 = arith.subf %3, %23 : vector<56x32xf32>
    %25 = math.exp %24 : vector<56x32xf32>
    %c0_12 = arith.constant 0 : index
    %c0_13 = arith.constant 0 : index
    %26 = vector.load %arg6[%c0_12, %c0_13] : memref<56x1xf32, #tpu.memory_space<vmem>>, vector<56x1xf32>
    %27 = arith.subf %21, %22 : vector<56x1xf32>
    %28 = math.exp %27 : vector<56x1xf32>
    %29 = arith.mulf %26, %28 : vector<56x1xf32>
    %cst_14 = arith.constant dense<0.000000e+00> : vector<56xf32>
    %30 = vector.multi_reduction <add>, %25, %cst_14 [1] : vector<56x32xf32> to vector<56xf32>
    %31 = vector.shape_cast %30 : vector<56xf32> to vector<56x1xf32>
    %32 = arith.addf %29, %31 : vector<56x1xf32>
    %c0_15 = arith.constant 0 : index
    %c0_16 = arith.constant 0 : index
    %33 = vector.load %arg6[%c0_15, %c0_16] : memref<56x1xf32, #tpu.memory_space<vmem>>, vector<56x1xf32>
    tpu.vector_store %arg6[%c0_15, %c0_16], %32 {strides = array<i32>} : memref<56x1xf32, #tpu.memory_space<vmem>>, vector<56x1xf32>,
    %c0_17 = arith.constant 0 : index
    %c0_18 = arith.constant 0 : index
    %34 = vector.load %arg5[%c0_17, %c0_18] : memref<56x1xf32, #tpu.memory_space<vmem>>, vector<56x1xf32>
    tpu.vector_store %arg5[%c0_17, %c0_18], %22 {strides = array<i32>} : memref<56x1xf32, #tpu.memory_space<vmem>>, vector<56x1xf32>,
    %c0_i32_19 = arith.constant 0 : i32
    %35 = arith.cmpi eq, %arg1, %c0_i32_19 : i32
    %36 = arith.extui %35 : i1 to i32
    %c0_i32_20 = arith.constant 0 : i32
    %37 = arith.cmpi ne, %36, %c0_i32_20 : i32
    scf.if %37 {
      %c0_21 = arith.constant 0 : index
      %c0_22 = arith.constant 0 : index
      %38 = vector.load %arg6[%c0_21, %c0_22] : memref<56x1xf32, #tpu.memory_space<vmem>>, vector<56x1xf32>
      %39 = math.log %38 : vector<56x1xf32>
      %c0_23 = arith.constant 0 : index
      %c0_24 = arith.constant 0 : index
      %40 = vector.load %arg5[%c0_23, %c0_24] : memref<56x1xf32, #tpu.memory_space<vmem>>, vector<56x1xf32>
      %41 = arith.addf %39, %40 : vector<56x1xf32>
      %c0_25 = arith.constant 0 : index
      %c1 = arith.constant 1 : index
      %42 = vector.load %arg3[%c0_25, %c1] : memref<56x2xf32, #tpu.memory_space<vmem>>, vector<56x1xf32>
      %cst_26 = arith.constant 0.000000e+00 : f32
      %43 = vector.broadcast %cst_26 : f32 to vector<56x1xf32>
      %44 = arith.cmpf oge, %4, %43 : vector<56x1xf32>
      %c0_27 = arith.constant 0 : index
      %c0_28 = arith.constant 0 : index
      %45 = vector.load %arg7[%c0_27, %c0_28] : memref<56x1xf32, #tpu.memory_space<vmem>>, vector<56x1xf32>
      %46 = arith.subf %45, %41 : vector<56x1xf32>
      %47 = arith.mulf %42, %46 : vector<56x1xf32>
      %cst_29 = arith.constant 0.000000e+00 : f32
      %48 = vector.broadcast %cst_29 : f32 to vector<56x1xf32>
      %49 = arith.select %44, %47, %48 : vector<56x1xi1>, vector<56x1xf32>
      %50 = vector.shape_cast %49 : vector<56x1xf32> to vector<1x56x1xf32>
      %cst_30 = arith.constant dense<0.000000e+00> : vector<1xf32>
      %51 = vector.multi_reduction <add>, %50, %cst_30 [1, 2] : vector<1x56x1xf32> to vector<1xf32>
      %52 = vector.shape_cast %51 : vector<1xf32> to vector<1x1x1xf32>
      %53 = vector.extract %52[0, 0, 0] : f32 from vector<1x1x1xf32>
      %c0_31 = arith.constant 0 : index
      %c0_32 = arith.constant 0 : index
      %54 = memref.load %arg4[%c0_31, %c0_32] : memref<1x2xf32, #tpu.memory_space<smem>>
      memref.store %53, %arg4[%c0_31, %c0_32] : memref<1x2xf32, #tpu.memory_space<smem>>
      %cst_33 = arith.constant 1.000000e+00 : f32
      %cst_34 = arith.constant 0.000000e+00 : f32
      %55 = vector.broadcast %cst_33 : f32 to vector<56x1xf32>
      %56 = vector.broadcast %cst_34 : f32 to vector<56x1xf32>
      %57 = arith.select %44, %55, %56 : vector<56x1xi1>, vector<56x1xf32>
      %58 = vector.shape_cast %57 : vector<56x1xf32> to vector<1x56x1xf32>
      %cst_35 = arith.constant dense<0.000000e+00> : vector<1xf32>
      %59 = vector.multi_reduction <add>, %58, %cst_35 [1, 2] : vector<1x56x1xf32> to vector<1xf32>
      %60 = vector.shape_cast %59 : vector<1xf32> to vector<1x1x1xf32>
      %61 = vector.extract %60[0, 0, 0] : f32 from vector<1x1x1xf32>
      %c0_36 = arith.constant 0 : index
      %c1_37 = arith.constant 1 : index
      %62 = memref.load %arg4[%c0_36, %c1_37] : memref<1x2xf32, #tpu.memory_space<smem>>
      memref.store %61, %arg4[%c0_36, %c1_37] : memref<1x2xf32, #tpu.memory_space<smem>>
    } else {
    }
    return
  }
  func.func @transform_0(%arg0: i32, %arg1: i32) -> (i32, i32) {
    %c0_i32 = arith.constant 0 : i32
    return %arg0, %arg1 : i32, i32
  }
  func.func @transform_1(%arg0: i32, %arg1: i32) -> (i32, i32) {
    %c0_i32 = arith.constant 0 : i32
    %c0_i32_0 = arith.constant 0 : i32
    return %arg0, %c0_i32 : i32, i32
  }
  func.func @transform_2(%arg0: i32, %arg1: i32) -> (i32, i32) {
    %c0_i32 = arith.constant 0 : i32
    %c0_i32_0 = arith.constant 0 : i32
    return %arg0, %c0_i32 : i32, i32
  }
}

</mosaic_0001>

<llo_original>
// kernel: cus2_loss.1
$region0: #{cus2_loss.1}
  #allocation0 [shape = 'u32[]', space=smem, size = 0x4, offset = 0x4, fixed_abs, tag = 'smem constant byte address 0x4 - core index']
  #allocation1 [shape = 'u32[144,128]{1,0:T(1,128)}', space=vmem, size = 0x12000, scoped, tag = 'internal scratch']
  #allocation2 [shape = 'f32[56,1]{1,0:T(8,128)}', space=vmem, size = 0x7000, scoped, tag = 'scratch operand']
  #allocation3 [shape = 'f32[56,1]{1,0:T(8,128)}', space=vmem, size = 0x7000, scoped, tag = 'scratch operand']
  #allocation4 [shape = 'f32[56,1]{1,0:T(8,128)}', space=vmem, size = 0x7000, scoped, tag = 'scratch operand']
  %s0 = inlined_call_operand.vmem [shape: f32[50,32], index: 0, kind: input, shape index: {}]
  %s1 = inlined_call_operand.vmem [shape: f32[56,2], index: 1, kind: input, shape index: {}]
  %s2 = inlined_call_operand.vmem [shape: f32[1,2], index: 2, kind: output, shape index: {}]
  %s3 = sld [smem:[#allocation0]]
  $region26: #{cus2_loss.1} parent=0
    _
  %s5 = ssub.s32 1, %s3
  %s6 = scalar_select 0, %s5, %s3
  $region1: #{cus2_loss.1} parent=0
    #allocation5 [shape = 'u8[512]{0}', space=smem, size = 0x200, scoped, tag = 'output window, operand 0, single buffered']
    #allocation6 [shape = 's32[1]{0}', space=sflag, size = 0x4, scoped, tag = 'scoped memory for cus2_loss.1']
    %7 = vsyncpa [#allocation6], 0
    // Predicated region
    $region2: #{cus2_loss.1} parent=1 // pred_check
      _
    $region3: #{cus2_loss.1} parent=1 // pred_check_branch
      %9 = sbr.rel (0) target = $region5
    $region4: #{cus2_loss.1} parent=1 // pred_region
      _
    $region5: #{cus2_loss.1} parent=1 // pred_fallthru
      _
    // Predicated region
    $region6: #{cus2_loss.1} parent=1 // pred_check
      _
    $region7: #{cus2_loss.1} parent=1 // pred_check_branch
      %11 = sbr.rel (0) target = $region9
    $region8: #{cus2_loss.1} parent=1 // pred_region
      _
    $region9: #{cus2_loss.1} parent=1 // pred_fallthru
      _
    %p12 = scmp.eq.s32.totalorder 0, 0
    // Predicated region
    $region10: #{cus2_loss.1} parent=1 // pred_check
      %p13 = pneg %p12
    $region11: #{cus2_loss.1} parent=1 // pred_check_branch
      %15 = sbr.rel (%p13) target = $region13
    $region12: #{cus2_loss.1} parent=1 // pred_region
      %vm16 = vcmask 7168
      %17 = vst.msk [vmem:[#allocation2] sm:$0xff] %vm16, -inf
      %18 = vst.msk [vmem:[#allocation2 + $0x8] sm:$0xff] %vm16, -inf
      %19 = vst.msk [vmem:[#allocation2 + $0x10] sm:$0xff] %vm16, -inf
      %20 = vst.msk [vmem:[#allocation2 + $0x18] sm:$0xff] %vm16, -inf
      %21 = vst.msk [vmem:[#allocation2 + $0x20] sm:$0xff] %vm16, -inf
      %22 = vst.msk [vmem:[#allocation2 + $0x28] sm:$0xff] %vm16, -inf
      %23 = vst.msk [vmem:[#allocation2 + $0x30] sm:$0xff] %vm16, -inf
      %24 = vst.msk [vmem:[#allocation3] sm:$0xff] %vm16, 0.0
      %25 = vst.msk [vmem:[#allocation3 + $0x8] sm:$0xff] %vm16, 0.0
      %26 = vst.msk [vmem:[#allocation3 + $0x10] sm:$0xff] %vm16, 0.0
      %27 = vst.msk [vmem:[#allocation3 + $0x18] sm:$0xff] %vm16, 0.0
      %28 = vst.msk [vmem:[#allocation3 + $0x20] sm:$0xff] %vm16, 0.0
      %29 = vst.msk [vmem:[#allocation3 + $0x28] sm:$0xff] %vm16, 0.0
      %30 = vst.msk [vmem:[#allocation3 + $0x30] sm:$0xff] %vm16, 0.0
      %31 = vst.msk [vmem:[#allocation4] sm:$0xff] %vm16, 0.0
      %32 = vst.msk [vmem:[#allocation4 + $0x8] sm:$0xff] %vm16, 0.0
      %33 = vst.msk [vmem:[#allocation4 + $0x10] sm:$0xff] %vm16, 0.0
      %34 = vst.msk [vmem:[#allocation4 + $0x18] sm:$0xff] %vm16, 0.0
      %35 = vst.msk [vmem:[#allocation4 + $0x20] sm:$0xff] %vm16, 0.0
      %36 = vst.msk [vmem:[#allocation4 + $0x28] sm:$0xff] %vm16, 0.0
      %37 = vst.msk [vmem:[#allocation4 + $0x30] sm:$0xff] %vm16, 0.0
    $region13: #{cus2_loss.1} parent=1 // pred_fallthru
      _
    %v38 = vld [vmem:[%s0] sm:$0xff]
    %v39 = vld [vmem:[%s0 + $0x8] sm:$0xff]
    %v40 = vld [vmem:[%s0 + $0x10] sm:$0xff]
    %v41 = vld [vmem:[%s0 + $0x18] sm:$0xff]
    %v42 = vld [vmem:[%s0 + $0x20] sm:$0xff]
    %v43 = vld [vmem:[%s0 + $0x28] sm:$0xff]
    %v44 = vld [vmem:[%s0 + $0x30] sm:$0xff]
    %v45 = vld [vmem:[%s1] sm:$0xff]
    %v46 = vld [vmem:[%s1 + $0x8] sm:$0xff]
    %v47 = vld [vmem:[%s1 + $0x10] sm:$0xff]
    %v48 = vld [vmem:[%s1 + $0x18] sm:$0xff]
    %v49 = vld [vmem:[%s1 + $0x20] sm:$0xff]
    %v50 = vld [vmem:[%s1 + $0x28] sm:$0xff]
    %v51 = vld [vmem:[%s1 + $0x30] sm:$0xff]
    %v52 = vcvt.f32.s32.to.zero.pseudo %v45
    %v53 = vcvt.f32.s32.to.zero.pseudo %v46
    %v54 = vcvt.f32.s32.to.zero.pseudo %v47
    %v55 = vcvt.f32.s32.to.zero.pseudo %v48
    %v56 = vcvt.f32.s32.to.zero.pseudo %v49
    %v57 = vcvt.f32.s32.to.zero.pseudo %v50
    %v58 = vcvt.f32.s32.to.zero.pseudo %v51
    %v59 = vlaneseq
    %v60 = vand.u32 %v59, 127
    %s61 = smul.u32 0, 32
    %v62 = vstv %s61
    %v63 = vadd.s32 %v60, %v62
    %v64 = vld [vmem:[#allocation4] sm:$0xff]
    %v65 = vld [vmem:[#allocation4 + $0x8] sm:$0xff]
    %v66 = vld [vmem:[#allocation4 + $0x10] sm:$0xff]
    %v67 = vld [vmem:[#allocation4 + $0x18] sm:$0xff]
    %v68 = vld [vmem:[#allocation4 + $0x20] sm:$0xff]
    %v69 = vld [vmem:[#allocation4 + $0x28] sm:$0xff]
    %v70 = vld [vmem:[#allocation4 + $0x30] sm:$0xff]
    %71 = vset.pattern.permute.xlu0 0
    %72 = vperm.xlu0 %71, %v52
    %v73 = vpop.permute.xlu0 %72
    %74 = vset.pattern.permute.xlu0 0
    %75 = vperm.xlu0 %74, %v53
    %v76 = vpop.permute.xlu0 %75
    %77 = vset.pattern.permute.xlu0 0
    %78 = vperm.xlu0 %77, %v54
    %v79 = vpop.permute.xlu0 %78
    %80 = vset.pattern.permute.xlu0 0
    %81 = vperm.xlu0 %80, %v55
    %v82 = vpop.permute.xlu0 %81
    %83 = vset.pattern.permute.xlu0 0
    %84 = vperm.xlu0 %83, %v56
    %v85 = vpop.permute.xlu0 %84
    %86 = vset.pattern.permute.xlu0 0
    %87 = vperm.xlu0 %86, %v57
    %v88 = vpop.permute.xlu0 %87
    %89 = vset.pattern.permute.xlu0 0
    %90 = vperm.xlu0 %89, %v58
    %v91 = vpop.permute.xlu0 %90
    %vm92 = vcmp.eq.s32.totalorder %v63, %v73
    %vm93 = vcmp.eq.s32.totalorder %v63, %v76
    %vm94 = vcmp.eq.s32.totalorder %v63, %v79
    %vm95 = vcmp.eq.s32.totalorder %v63, %v82
    %vm96 = vcmp.eq.s32.totalorder %v63, %v85
    %vm97 = vcmp.eq.s32.totalorder %v63, %v88
    %vm98 = vcmp.eq.s32.totalorder %v63, %v91
    %v99 = vsel %vm92, %v38, 0.0
    %v100 = vsel %vm93, %v39, 0.0
    %v101 = vsel %vm94, %v40, 0.0
    %v102 = vsel %vm95, %v41, 0.0
    %v103 = vsel %vm96, %v42, 0.0
    %v104 = vsel %vm97, %v43, 0.0
    %v105 = vsel %vm98, %v44, 0.0
    %vm106 = vcmask 261120
    %v107 = vsel %vm106, %v99, 0.0
    %108 = vadd.xlane.f32.xlu0 %v107
    %v109 = vpop.xlane.xlu0 %108
    %v110 = vsel %vm106, %v100, 0.0
    %111 = vadd.xlane.f32.xlu0 %v110
    %v112 = vpop.xlane.xlu0 %111
    %v113 = vsel %vm106, %v101, 0.0
    %114 = vadd.xlane.f32.xlu0 %v113
    %v115 = vpop.xlane.xlu0 %114
    %v116 = vsel %vm106, %v102, 0.0
    %117 = vadd.xlane.f32.xlu0 %v116
    %v118 = vpop.xlane.xlu0 %117
    %v119 = vsel %vm106, %v103, 0.0
    %120 = vadd.xlane.f32.xlu0 %v119
    %v121 = vpop.xlane.xlu0 %120
    %v122 = vsel %vm106, %v104, 0.0
    %123 = vadd.xlane.f32.xlu0 %v122
    %v124 = vpop.xlane.xlu0 %123
    %v125 = vsel %vm106, %v105, 0.0
    %126 = vadd.xlane.f32.xlu0 %v125
    %v127 = vpop.xlane.xlu0 %126
    %v128 = vadd.f32 %v64, %v109
    %v129 = vadd.f32 %v65, %v112
    %v130 = vadd.f32 %v66, %v115
    %v131 = vadd.f32 %v67, %v118
    %v132 = vadd.f32 %v68, %v121
    %v133 = vadd.f32 %v69, %v124
    %v134 = vadd.f32 %v70, %v127
    %vm135 = vcmask 7168
    %136 = vst.msk [vmem:[#allocation4] sm:$0xff] %vm135, %v128
    %137 = vst.msk [vmem:[#allocation4 + $0x8] sm:$0xff] %vm135, %v129
    %138 = vst.msk [vmem:[#allocation4 + $0x10] sm:$0xff] %vm135, %v130
    %139 = vst.msk [vmem:[#allocation4 + $0x18] sm:$0xff] %vm135, %v131
    %140 = vst.msk [vmem:[#allocation4 + $0x20] sm:$0xff] %vm135, %v132
    %141 = vst.msk [vmem:[#allocation4 + $0x28] sm:$0xff] %vm135, %v133
    %142 = vst.msk [vmem:[#allocation4 + $0x30] sm:$0xff] %vm135, %v134
    %v143 = vsel %vm106, %v38, -inf
    %144 = vmax.xlane.f32.xlu0 %v143
    %v145 = vpop.xlane.xlu0 %144
    %v146 = vsel %vm106, %v39, -inf
    %147 = vmax.xlane.f32.xlu0 %v146
    %v148 = vpop.xlane.xlu0 %147
    %v149 = vsel %vm106, %v40, -inf
    %150 = vmax.xlane.f32.xlu0 %v149
    %v151 = vpop.xlane.xlu0 %150
    %v152 = vsel %vm106, %v41, -inf
    %153 = vmax.xlane.f32.xlu0 %v152
    %v154 = vpop.xlane.xlu0 %153
    %v155 = vsel %vm106, %v42, -inf
    %156 = vmax.xlane.f32.xlu0 %v155
    %v157 = vpop.xlane.xlu0 %156
    %v158 = vsel %vm106, %v43, -inf
    %159 = vmax.xlane.f32.xlu0 %v158
    %v160 = vpop.xlane.xlu0 %159
    %v161 = vsel %vm106, %v44, -inf
    %162 = vmax.xlane.f32.xlu0 %v161
    %v163 = vpop.xlane.xlu0 %162
    %v164 = vld [vmem:[#allocation2] sm:$0xff]
    %v165 = vld [vmem:[#allocation2 + $0x8] sm:$0xff]
    %v166 = vld [vmem:[#allocation2 + $0x10] sm:$0xff]
    %v167 = vld [vmem:[#allocation2 + $0x18] sm:$0xff]
    %v168 = vld [vmem:[#allocation2 + $0x20] sm:$0xff]
    %v169 = vld [vmem:[#allocation2 + $0x28] sm:$0xff]
    %v170 = vld [vmem:[#allocation2 + $0x30] sm:$0xff]
    %v171 = vmax.f32 %v164, %v145
    %v172 = vmax.f32 %v165, %v148
    %v173 = vmax.f32 %v166, %v151
    %v174 = vmax.f32 %v167, %v154
    %v175 = vmax.f32 %v168, %v157
    %v176 = vmax.f32 %v169, %v160
    %v177 = vmax.f32 %v170, %v163
    %179 = vset.pattern.permute.xlu0 0
    %180 = vperm.xlu0 %179, %v171
    %v181 = vpop.permute.xlu0 %180
    %184 = vset.pattern.permute.xlu0 0
    %185 = vperm.xlu0 %184, %v172
    %v186 = vpop.permute.xlu0 %185
    %189 = vset.pattern.permute.xlu0 0
    %190 = vperm.xlu0 %189, %v173
    %v191 = vpop.permute.xlu0 %190
    %194 = vset.pattern.permute.xlu0 0
    %195 = vperm.xlu0 %194, %v174
    %v196 = vpop.permute.xlu0 %195
    %199 = vset.pattern.permute.xlu0 0
    %200 = vperm.xlu0 %199, %v175
    %v201 = vpop.permute.xlu0 %200
    %204 = vset.pattern.permute.xlu0 0
    %205 = vperm.xlu0 %204, %v176
    %v206 = vpop.permute.xlu0 %205
    %209 = vset.pattern.permute.xlu0 0
    %210 = vperm.xlu0 %209, %v177
    %v211 = vpop.permute.xlu0 %210
    %v213 = vsub.f32 %v38, %v181
    %v214 = vsub.f32 %v39, %v186
    %v215 = vsub.f32 %v40, %v191
    %v216 = vsub.f32 %v41, %v196
    %v217 = vsub.f32 %v42, %v201
    %v218 = vsub.f32 %v43, %v206
    %v219 = vsub.f32 %v44, %v211
    %v220 = vmul.f32 %v213, 1.442695
    %v221 = vpow.pop %v220
    %v222 = vmul.f32 %v214, 1.442695
    %v223 = vpow.pop %v222
    %v224 = vmul.f32 %v215, 1.442695
    %v225 = vpow.pop %v224
    %v226 = vmul.f32 %v216, 1.442695
    %v227 = vpow.pop %v226
    %v228 = vmul.f32 %v217, 1.442695
    %v229 = vpow.pop %v228
    %v230 = vmul.f32 %v218, 1.442695
    %v231 = vpow.pop %v230
    %v232 = vmul.f32 %v219, 1.442695
    %v233 = vpow.pop %v232
    %v234 = vld [vmem:[#allocation3] sm:$0xff]
    %v235 = vld [vmem:[#allocation3 + $0x8] sm:$0xff]
    %v236 = vld [vmem:[#allocation3 + $0x10] sm:$0xff]
    %v237 = vld [vmem:[#allocation3 + $0x18] sm:$0xff]
    %v238 = vld [vmem:[#allocation3 + $0x20] sm:$0xff]
    %v239 = vld [vmem:[#allocation3 + $0x28] sm:$0xff]
    %v240 = vld [vmem:[#allocation3 + $0x30] sm:$0xff]
    %v241 = vsub.f32 %v164, %v171
    %v242 = vsub.f32 %v165, %v172
    %v243 = vsub.f32 %v166, %v173
    %v244 = vsub.f32 %v167, %v174
    %v245 = vsub.f32 %v168, %v175
    %v246 = vsub.f32 %v169, %v176
    %v247 = vsub.f32 %v170, %v177
    %v248 = vmul.f32 %v241, 1.442695
    %v249 = vpow.pop %v248
    %v250 = vmul.f32 %v242, 1.442695
    %v251 = vpow.pop %v250
    %v252 = vmul.f32 %v243, 1.442695
    %v253 = vpow.pop %v252
    %v254 = vmul.f32 %v244, 1.442695
    %v255 = vpow.pop %v254
    %v256 = vmul.f32 %v245, 1.442695
    %v257 = vpow.pop %v256
    %v258 = vmul.f32 %v246, 1.442695
    %v259 = vpow.pop %v258
    %v260 = vmul.f32 %v247, 1.442695
    %v261 = vpow.pop %v260
    %v262 = vmul.f32 %v234, %v249
    %v263 = vmul.f32 %v235, %v251
    %v264 = vmul.f32 %v236, %v253
    %v265 = vmul.f32 %v237, %v255
    %v266 = vmul.f32 %v238, %v257
    %v267 = vmul.f32 %v239, %v259
    %v268 = vmul.f32 %v240, %v261
    %v269 = vsel %vm106, %v221, 0.0
    %270 = vadd.xlane.f32.xlu0 %v269
    %v271 = vpop.xlane.xlu0 %270
    %v272 = vsel %vm106, %v223, 0.0
    %273 = vadd.xlane.f32.xlu0 %v272
    %v274 = vpop.xlane.xlu0 %273
    %v275 = vsel %vm106, %v225, 0.0
    %276 = vadd.xlane.f32.xlu0 %v275
    %v277 = vpop.xlane.xlu0 %276
    %v278 = vsel %vm106, %v227, 0.0
    %279 = vadd.xlane.f32.xlu0 %v278
    %v280 = vpop.xlane.xlu0 %279
    %v281 = vsel %vm106, %v229, 0.0
    %282 = vadd.xlane.f32.xlu0 %v281
    %v283 = vpop.xlane.xlu0 %282
    %v284 = vsel %vm106, %v231, 0.0
    %285 = vadd.xlane.f32.xlu0 %v284
    %v286 = vpop.xlane.xlu0 %285
    %v287 = vsel %vm106, %v233, 0.0
    %288 = vadd.xlane.f32.xlu0 %v287
    %v289 = vpop.xlane.xlu0 %288
    %v290 = vadd.f32 %v262, %v271
    %v291 = vadd.f32 %v263, %v274
    %v292 = vadd.f32 %v264, %v277
    %v293 = vadd.f32 %v265, %v280
    %v294 = vadd.f32 %v266, %v283
    %v295 = vadd.f32 %v267, %v286
    %v296 = vadd.f32 %v268, %v289
    %297 = vst.msk [vmem:[#allocation3] sm:$0xff] %vm135, %v290
    %298 = vst.msk [vmem:[#allocation3 + $0x8] sm:$0xff] %vm135, %v291
    %299 = vst.msk [vmem:[#allocation3 + $0x10] sm:$0xff] %vm135, %v292
    %300 = vst.msk [vmem:[#allocation3 + $0x18] sm:$0xff] %vm135, %v293
    %301 = vst.msk [vmem:[#allocation3 + $0x20] sm:$0xff] %vm135, %v294
    %302 = vst.msk [vmem:[#allocation3 + $0x28] sm:$0xff] %vm135, %v295
    %303 = vst.msk [vmem:[#allocation3 + $0x30] sm:$0xff] %vm135, %v296
    %304 = vst.msk [vmem:[#allocation2] sm:$0xff] %vm135, %v171
    %305 = vst.msk [vmem:[#allocation2 + $0x8] sm:$0xff] %vm135, %v172
    %306 = vst.msk [vmem:[#allocation2 + $0x10] sm:$0xff] %vm135, %v173
    %307 = vst.msk [vmem:[#allocation2 + $0x18] sm:$0xff] %vm135, %v174
    %308 = vst.msk [vmem:[#allocation2 + $0x20] sm:$0xff] %vm135, %v175
    %309 = vst.msk [vmem:[#allocation2 + $0x28] sm:$0xff] %vm135, %v176
    %310 = vst.msk [vmem:[#allocation2 + $0x30] sm:$0xff] %vm135, %v177
    // Predicated region
    $region14: #{cus2_loss.1} parent=1 // pred_check
      %p311 = pneg %p12
    $region15: #{cus2_loss.1} parent=1 // pred_check_branch
      %313 = sbr.rel (%p311) target = $region17
    $region16: #{cus2_loss.1} parent=1 // pred_region
      %v314 = vld [vmem:[#allocation3] sm:$0xff]
      %v315 = vld [vmem:[#allocation3 + $0x8] sm:$0xff]
      %v316 = vld [vmem:[#allocation3 + $0x10] sm:$0xff]
      %v317 = vld [vmem:[#allocation3 + $0x18] sm:$0xff]
      %v318 = vld [vmem:[#allocation3 + $0x20] sm:$0xff]
      %v319 = vld [vmem:[#allocation3 + $0x28] sm:$0xff]
      %v320 = vld [vmem:[#allocation3 + $0x30] sm:$0xff]
      %v321 = vlog2.pop %v314
      %v322 = vmul.f32 %v321, 0.6931472
      %v323 = vlog2.pop %v315
      %v324 = vmul.f32 %v323, 0.6931472
      %v325 = vlog2.pop %v316
      %v326 = vmul.f32 %v325, 0.6931472
      %v327 = vlog2.pop %v317
      %v328 = vmul.f32 %v327, 0.6931472
      %v329 = vlog2.pop %v318
      %v330 = vmul.f32 %v329, 0.6931472
      %v331 = vlog2.pop %v319
      %v332 = vmul.f32 %v331, 0.6931472
      %v333 = vlog2.pop %v320
      %v334 = vmul.f32 %v333, 0.6931472
      %v335 = vld [vmem:[#allocation2] sm:$0xff]
      %v336 = vld [vmem:[#allocation2 + $0x8] sm:$0xff]
      %v337 = vld [vmem:[#allocation2 + $0x10] sm:$0xff]
      %v338 = vld [vmem:[#allocation2 + $0x18] sm:$0xff]
      %v339 = vld [vmem:[#allocation2 + $0x20] sm:$0xff]
      %v340 = vld [vmem:[#allocation2 + $0x28] sm:$0xff]
      %v341 = vld [vmem:[#allocation2 + $0x30] sm:$0xff]
      %v342 = vadd.f32 %v322, %v335
      %v343 = vadd.f32 %v324, %v336
      %v344 = vadd.f32 %v326, %v337
      %v345 = vadd.f32 %v328, %v338
      %v346 = vadd.f32 %v330, %v339
      %v347 = vadd.f32 %v332, %v340
      %v348 = vadd.f32 %v334, %v341
      %v349 = vld [vmem:[%s1] sm:$0xff]
      %v350 = vld [vmem:[%s1 + $0x8] sm:$0xff]
      %v351 = vld [vmem:[%s1 + $0x10] sm:$0xff]
      %v352 = vld [vmem:[%s1 + $0x18] sm:$0xff]
      %v353 = vld [vmem:[%s1 + $0x20] sm:$0xff]
      %v354 = vld [vmem:[%s1 + $0x28] sm:$0xff]
      %v355 = vld [vmem:[%s1 + $0x30] sm:$0xff]
      %vm356 = vcmp.ge.f32.partialorder %v45, 0.0
      %vm357 = vcmp.ge.f32.partialorder %v46, 0.0
      %vm358 = vcmp.ge.f32.partialorder %v47, 0.0
      %vm359 = vcmp.ge.f32.partialorder %v48, 0.0
      %vm360 = vcmp.ge.f32.partialorder %v49, 0.0
      %vm361 = vcmp.ge.f32.partialorder %v50, 0.0
      %vm362 = vcmp.ge.f32.partialorder %v51, 0.0
      %v363 = vld [vmem:[#allocation4] sm:$0xff]
      %v364 = vld [vmem:[#allocation4 + $0x8] sm:$0xff]
      %v365 = vld [vmem:[#allocation4 + $0x10] sm:$0xff]
      %v366 = vld [vmem:[#allocation4 + $0x18] sm:$0xff]
      %v367 = vld [vmem:[#allocation4 + $0x20] sm:$0xff]
      %v368 = vld [vmem:[#allocation4 + $0x28] sm:$0xff]
      %v369 = vld [vmem:[#allocation4 + $0x30] sm:$0xff]
      %v370 = vsub.f32 %v363, %v342
      %v371 = vsub.f32 %v364, %v343
      %v372 = vsub.f32 %v365, %v344
      %v373 = vsub.f32 %v366, %v345
      %v374 = vsub.f32 %v367, %v346
      %v375 = vsub.f32 %v368, %v347
      %v376 = vsub.f32 %v369, %v348
      %384 = vrot.lane.b32.xlu0 %v370, 1
      %v385 = vpop.permute.xlu0 %384
      %386 = vrot.lane.b32.xlu0 %v371, 1
      %v387 = vpop.permute.xlu0 %386
      %388 = vrot.lane.b32.xlu0 %v372, 1
      %v389 = vpop.permute.xlu0 %388
      %390 = vrot.lane.b32.xlu0 %v373, 1
      %v391 = vpop.permute.xlu0 %390
      %392 = vrot.lane.b32.xlu0 %v374, 1
      %v393 = vpop.permute.xlu0 %392
      %394 = vrot.lane.b32.xlu0 %v375, 1
      %v395 = vpop.permute.xlu0 %394
      %396 = vrot.lane.b32.xlu0 %v376, 1
      %v397 = vpop.permute.xlu0 %396
      %v405 = vmul.f32 %v349, %v385
      %v406 = vmul.f32 %v350, %v387
      %v407 = vmul.f32 %v351, %v389
      %v408 = vmul.f32 %v352, %v391
      %v409 = vmul.f32 %v353, %v393
      %v410 = vmul.f32 %v354, %v395
      %v411 = vmul.f32 %v355, %v397
      %419 = vrot.lane.b32.xlu0 %v405, 127
      %v420 = vpop.permute.xlu0 %419
      %421 = vrot.lane.b32.xlu0 %v406, 127
      %v422 = vpop.permute.xlu0 %421
      %423 = vrot.lane.b32.xlu0 %v407, 127
      %v424 = vpop.permute.xlu0 %423
      %425 = vrot.lane.b32.xlu0 %v408, 127
      %v426 = vpop.permute.xlu0 %425
      %427 = vrot.lane.b32.xlu0 %v409, 127
      %v428 = vpop.permute.xlu0 %427
      %429 = vrot.lane.b32.xlu0 %v410, 127
      %v430 = vpop.permute.xlu0 %429
      %431 = vrot.lane.b32.xlu0 %v411, 127
      %v432 = vpop.permute.xlu0 %431
      %v440 = vsel %vm356, %v420, 0.0
      %v441 = vsel %vm357, %v422, 0.0
      %v442 = vsel %vm358, %v424, 0.0
      %v443 = vsel %vm359, %v426, 0.0
      %v444 = vsel %vm360, %v428, 0.0
      %v445 = vsel %vm361, %v430, 0.0
      %v446 = vsel %vm362, %v432, 0.0
      %v447 = vsel %vm135, %v440, 0.0
      %v448 = vsel %vm135, %v441, 0.0
      %v449 = vadd.f32 %v447, %v448
      %v450 = vsel %vm135, %v442, 0.0
      %v451 = vadd.f32 %v449, %v450
      %v452 = vsel %vm135, %v443, 0.0
      %v453 = vadd.f32 %v451, %v452
      %v454 = vsel %vm135, %v444, 0.0
      %v455 = vadd.f32 %v453, %v454
      %v456 = vsel %vm135, %v445, 0.0
      %v457 = vadd.f32 %v455, %v456
      %v458 = vsel %vm135, %v446, 0.0
      %v459 = vadd.f32 %v457, %v458
      %460 = vadd.xlane.f32.xlu0 %v459
      %v461 = vpop.xlane.xlu0 %460
      %v462 = vrot.slane %v461, 4
      %v463 = vadd.f32 %v461, %v462
      %v464 = vrot.slane %v463, 2
      %v465 = vadd.f32 %v463, %v464
      %v466 = vrot.slane %v465, 1
      %v467 = vadd.f32 %v465, %v466
      %s468 = vtos %v467
      %s469 = scalar_lea.smem [#allocation5], 0
      %470 = sst [smem:[%s469]] %s468
      %v471 = vsel %vm356, 1.0, 0.0
      %v472 = vsel %vm357, 1.0, 0.0
      %v473 = vsel %vm358, 1.0, 0.0
      %v474 = vsel %vm359, 1.0, 0.0
      %v475 = vsel %vm360, 1.0, 0.0
      %v476 = vsel %vm361, 1.0, 0.0
      %v477 = vsel %vm362, 1.0, 0.0
      %v478 = vsel %vm135, %v471, 0.0
      %v479 = vsel %vm135, %v472, 0.0
      %v480 = vadd.f32 %v478, %v479
      %v481 = vsel %vm135, %v473, 0.0
      %v482 = vadd.f32 %v480, %v481
      %v483 = vsel %vm135, %v474, 0.0
      %v484 = vadd.f32 %v482, %v483
      %v485 = vsel %vm135, %v475, 0.0
      %v486 = vadd.f32 %v484, %v485
      %v487 = vsel %vm135, %v476, 0.0
      %v488 = vadd.f32 %v486, %v487
      %v489 = vsel %vm135, %v477, 0.0
      %v490 = vadd.f32 %v488, %v489
      %491 = vadd.xlane.f32.xlu0 %v490
      %v492 = vpop.xlane.xlu0 %491
      %v493 = vrot.slane %v492, 4
      %v494 = vadd.f32 %v492, %v493
      %v495 = vrot.slane %v494, 2
      %v496 = vadd.f32 %v494, %v495
      %v497 = vrot.slane %v496, 1
      %v498 = vadd.f32 %v496, %v497
      %s499 = vtos %v498
      %s500 = scalar_lea.smem [#allocation5], 1
      %501 = sst [smem:[%s500]] %s499
    $region17: #{cus2_loss.1} parent=1 // pred_fallthru
      _
    // Predicated region
    $region18: #{cus2_loss.1} parent=1 // pred_check
      _
    $region19: #{cus2_loss.1} parent=1 // pred_check_branch
      %503 = sbr.rel (0) target = $region21
    $region20: #{cus2_loss.1} parent=1 // pred_region
      %s505 = ssub.s32 16, 16
      %506 = vsyncadd [#allocation6], %s505
      %s508 = sshll.u32 %s2, 4
      %s509 = int_to_ptr.vmem [resolvable:$true] %s508
      %511 = dma.smem_to_vmem [#allocation5], 16, %s509, [#allocation6]
    $region21: #{cus2_loss.1} parent=1 // pred_fallthru
      _
    // Predicated region
    $region22: #{cus2_loss.1} parent=1 // pred_check
      _
    $region23: #{cus2_loss.1} parent=1 // pred_check_branch
      %513 = sbr.rel (0) target = $region25
    $region24: #{cus2_loss.1} parent=1 // pred_region
      %514 = dma.done [#allocation6], 16
    $region25: #{cus2_loss.1} parent=1 // pred_fallthru
      _
    %515 = sfence
    %516 = vsyncpa [#allocation6], 1

</llo_original>
